<compile_context>
chip_gen: v7x
topology: tpu7x:2x2x1
jax: 0.10.0
libtpu: 0.0.40
codegen_flags: <defaults>
</compile_context>

<pallas_src>
import functools

import jax
import jax.numpy as jnp
from jax.experimental import pallas as pl
from jax.experimental.pallas import tpu as pltpu

LANE = 128            # lane width of the packed slab
TARGET_TILE_R = 1024  # row tile: 1024x128xf32 = 512 KiB per input block


def _neg_logsigmoid(d):
    # -logsigmoid(d) == softplus(-d), numerically stable form:
    #   max(-d, 0) + log1p(exp(-|d|))
    # NOTE(v5e): 2 EUP transcendentals per element (exp + log1p); with large
    # tiles v5e may become EUP-bound rather than HBM-bound. Left as-is.
    return jnp.maximum(-d, 0.0) + jnp.log1p(jnp.exp(-jnp.abs(d)))


def _partial_sum_kernel(tile_r, n_valid, needs_mask,
                        pos_ref, neg_ref, out_ref):
    """Per-tile partial sums of -logsigmoid(pos-neg), masked for padding."""
    d = pos_ref[...].astype(jnp.float32) - neg_ref[...].astype(jnp.float32)
    loss = _neg_logsigmoid(d)
    if needs_mask:
        i = pl.program_id(0)
        row = jax.lax.broadcasted_iota(jnp.int32, (tile_r, LANE), 0)
        col = jax.lax.broadcasted_iota(jnp.int32, (tile_r, LANE), 1)
        idx = i * (tile_r * LANE) + row * LANE + col
        loss = jnp.where(idx < n_valid, loss, 0.0)
    # Sublane-group partial sum: (tile_r,128) -> (8,128). Pure vector adds;
    # the single cross-lane reduce is done once in the wrapper (tiny).
    out_ref[...] = loss.reshape(tile_r // 8, 8, LANE).sum(axis=0)


def _elementwise_kernel(pos_ref, neg_ref, out_ref):
    d = pos_ref[...].astype(jnp.float32) - neg_ref[...].astype(jnp.float32)
    out_ref[...] = _neg_logsigmoid(d).astype(out_ref.dtype)


def _sublane_multiple(dtype):
    # f32 -> 8, bf16/f16 -> 16, int8/fp8 -> 32 (sub-32-bit sublane packing)
    return max(8, 32 // jnp.dtype(dtype).itemsize)


def _pack(x, n_rows_padded):
    flat = x.reshape(-1)
    pad = n_rows_padded * LANE - flat.size
    if pad:  # only materialize a pad when actually needed
        flat = jnp.pad(flat, (0, pad))
    return flat.reshape(n_rows_padded, LANE)


def pairwise_loss(pos_output, neg_output, return_mean=True):
    assert pos_output.shape == neg_output.shape
    orig_shape = pos_output.shape
    orig_dtype = pos_output.dtype
    n = pos_output.size

    sub = _sublane_multiple(orig_dtype)
    n_rows = pl.cdiv(n, LANE)
    # Big tiles for throughput, but never larger than the (padded) problem.
    tile_r = min(TARGET_TILE_R, pl.cdiv(n_rows, sub) * sub)
    n_rows_padded = pl.cdiv(n_rows, tile_r) * tile_r
    num_tiles = n_rows_padded // tile_r
    grid = (num_tiles,)

    pos2 = _pack(pos_output, n_rows_padded)
    neg2 = _pack(neg_output, n_rows_padded)

    in_spec = pl.BlockSpec((tile_r, LANE), lambda i: (i, 0))

    if return_mean:
        needs_mask = (n_rows_padded * LANE) != n
        partials = pl.pallas_call(
            functools.partial(_partial_sum_kernel, tile_r, n, needs_mask),
            out_shape=jax.ShapeDtypeStruct((num_tiles * 8, LANE), jnp.float32),
            grid_spec=pltpu.PrefetchScalarGridSpec(
                num_scalar_prefetch=0,
                grid=grid,
                in_specs=[in_spec, in_spec],
                out_specs=pl.BlockSpec((8, LANE), lambda i: (i, 0)),
            ),
            compiler_params=pltpu.CompilerParams(
                dimension_semantics=("parallel",)),
        )(pos2, neg2)
        # Tiny final reduce + normalize (kept outside so the grid stays fully
        # parallel -> both TensorCores on v7x).
        return (jnp.sum(partials) / jnp.float32(n)).astype(orig_dtype)

    out = pl.pallas_call(
        _elementwise_kernel,
        out_shape=jax.ShapeDtypeStruct((n_rows_padded, LANE), orig_dtype),
        grid_spec=pltpu.PrefetchScalarGridSpec(
            num_scalar_prefetch=0,
            grid=grid,
            in_specs=[in_spec, in_spec],
            out_specs=in_spec,
        ),
        compiler_params=pltpu.CompilerParams(
            dimension_semantics=("parallel",)),
    )(pos2, neg2)
    flat = out.reshape(-1)
    if flat.size != n:
        flat = flat[:n]
    return flat.reshape(orig_shape)


if __name__ == "__main__":
    key = jax.random.PRNGKey(0)
    k1, k2, k3, k4 = jax.random.split(key, 4)

    # small shapes: batch=2, channels=4, spatial=16x16 scores per pair
    pos = jax.random.normal(k1, (2, 4, 16, 16), dtype=jnp.float32)
    neg = jax.random.normal(k2, (2, 4, 16, 16), dtype=jnp.float32)

    mean_loss = jax.block_until_ready(pairwise_loss(pos, neg, return_mean=True))
    elem_loss = jax.block_until_ready(pairwise_loss(pos, neg, return_mean=False))

    ref = -jax.nn.log_sigmoid(pos - neg)
    assert jnp.allclose(elem_loss, ref, atol=1e-5, rtol=1e-5)
    assert jnp.allclose(mean_loss, jnp.mean(ref), atol=1e-5, rtol=1e-5)

    # ragged size (exercises the in-kernel padding mask on the mean path)
    pos_r = jax.random.normal(k3, (3, 5, 7), dtype=jnp.float32)
    neg_r = jax.random.normal(k4, (3, 5, 7), dtype=jnp.float32)
    mean_r = jax.block_until_ready(pairwise_loss(pos_r, neg_r, return_mean=True))
    elem_r = jax.block_until_ready(pairwise_loss(pos_r, neg_r, return_mean=False))
    ref_r = -jax.nn.log_sigmoid(pos_r - neg_r)
    assert jnp.allclose(elem_r, ref_r, atol=1e-5, rtol=1e-5)
    assert jnp.allclose(mean_r, jnp.mean(ref_r), atol=1e-5, rtol=1e-5)

    print("KERNEL_OK")
</pallas_src>

<mosaic_0001>
module attributes {stable_mosaic.version = 11 : i64} {
  func.func @_partial_sum_kernel(%arg0: i32, %arg1: memref<16x128xf32, #tpu.memory_space<vmem>>, %arg2: memref<16x128xf32, #tpu.memory_space<vmem>>, %arg3: memref<8x128xf32, #tpu.memory_space<vmem>>) attributes {dimension_semantics = [#tpu.dimension_semantics<parallel>], iteration_bounds = array<i64: 1>, scalar_prefetch = 0 : i64, scratch_operands = 0 : i64, tpu.core_type = #tpu.core_type<tc>, window_params = [{transform_indices = @transform_0, window_bounds = array<i64: 16, 128>}, {transform_indices = @transform_1, window_bounds = array<i64: 16, 128>}, {transform_indices = @transform_2, window_bounds = array<i64: 8, 128>}]} {
    %c0 = arith.constant 0 : index
    %c0_0 = arith.constant 0 : index
    %0 = vector.load %arg1[%c0, %c0_0] : memref<16x128xf32, #tpu.memory_space<vmem>>, vector<16x128xf32>
    %c0_1 = arith.constant 0 : index
    %c0_2 = arith.constant 0 : index
    %1 = vector.load %arg2[%c0_1, %c0_2] : memref<16x128xf32, #tpu.memory_space<vmem>>, vector<16x128xf32>
    %2 = arith.subf %0, %1 : vector<16x128xf32>
    %cst = arith.constant 0.000000e+00 : f32
    %3 = vector.broadcast %cst : f32 to vector<16x128xf32>
    %4 = arith.subf %3, %2 : vector<16x128xf32>
    %cst_3 = arith.constant 0.000000e+00 : f32
    %5 = vector.broadcast %cst_3 : f32 to vector<16x128xf32>
    %6 = arith.maximumf %4, %5 : vector<16x128xf32>
    %7 = math.absf %2 : vector<16x128xf32>
    %cst_4 = arith.constant 0.000000e+00 : f32
    %8 = vector.broadcast %cst_4 : f32 to vector<16x128xf32>
    %9 = arith.subf %8, %7 : vector<16x128xf32>
    %10 = math.exp %9 : vector<16x128xf32>
    %11 = math.log1p %10 : vector<16x128xf32>
    %12 = arith.addf %6, %11 : vector<16x128xf32>
    %13 = vector.shape_cast %12 : vector<16x128xf32> to vector<2x8x128xf32>
    %cst_5 = arith.constant dense<0.000000e+00> : vector<8x128xf32>
    %14 = vector.multi_reduction <add>, %13, %cst_5 [0] : vector<2x8x128xf32> to vector<8x128xf32>
    %c0_6 = arith.constant 0 : index
    %c0_7 = arith.constant 0 : index
    %15 = vector.load %arg3[%c0_6, %c0_7] : memref<8x128xf32, #tpu.memory_space<vmem>>, vector<8x128xf32>
    tpu.vector_store %arg3[%c0_6, %c0_7], %14 {strides = array<i32>} : memref<8x128xf32, #tpu.memory_space<vmem>>, vector<8x128xf32>,
    return
  }
  func.func @transform_0(%arg0: i32) -> (i32, i32) {
    %c0_i32 = arith.constant 0 : i32
    %c0_i32_0 = arith.constant 0 : i32
    return %arg0, %c0_i32 : i32, i32
  }
  func.func @transform_1(%arg0: i32) -> (i32, i32) {
    %c0_i32 = arith.constant 0 : i32
    %c0_i32_0 = arith.constant 0 : i32
    return %arg0, %c0_i32 : i32, i32
  }
  func.func @transform_2(%arg0: i32) -> (i32, i32) {
    %c0_i32 = arith.constant 0 : i32
    %c0_i32_0 = arith.constant 0 : i32
    return %arg0, %c0_i32 : i32, i32
  }
}

</mosaic_0001>

<llo_original>
// kernel: tpu_custom_call.1
$region0: #{tpu_custom_call.1}
  #allocation0 [shape = 'u32[]', space=smem, size = 0x4, offset = 0x4, fixed_abs, tag = 'smem constant byte address 0x4 - core index']
  #allocation1 [shape = 'u32[144,128]{1,0:T(1,128)}', space=vmem, size = 0x12000, scoped, tag = 'internal scratch']
  %s0 = inlined_call_operand.hbm [shape: f32[16,128], index: 0, kind: input, shape index: {}]
  %s1 = inlined_call_operand.hbm [shape: f32[16,128], index: 1, kind: input, shape index: {}]
  %s2 = inlined_call_operand.hbm [shape: f32[8,128], index: 2, kind: output, shape index: {}]
  %s3 = sld [smem:[#allocation0]]
  $region26: #{tpu_custom_call.1} parent=0
    _
  %s5 = ssub.s32 1, %s3
  %s6 = scalar_select 0, %s5, %s3
  $region1: #{tpu_custom_call.1} parent=0
    #allocation2 [shape = 'u8[8192]{0}', space=vmem, size = 0x2000, scoped, tag = 'input window, operand 0, single buffered']
    #allocation3 [shape = 's32[1]{0}', space=sflag, size = 0x4, scoped, tag = 'scoped memory for tpu_custom_call.1']
    #allocation4 [shape = 's32[1]{0}', space=sflag, size = 0x4, scoped, tag = 'scoped memory for tpu_custom_call.1']
    #allocation5 [shape = 'u8[8192]{0}', space=vmem, size = 0x2000, scoped, tag = 'input window, operand 1, single buffered']
    #allocation6 [shape = 's32[1]{0}', space=sflag, size = 0x4, scoped, tag = 'scoped memory for tpu_custom_call.1']
    #allocation7 [shape = 'u8[4096]{0}', space=vmem, size = 0x1000, scoped, tag = 'output window, operand 0, single buffered']
    %7 = vsyncpa [#allocation3], 0
    %8 = vsyncpa [#allocation6], 0
    %9 = vsyncpa [#allocation4], 0
    // Predicated region
    $region2: #{tpu_custom_call.1} parent=1 // pred_check
      _
    $region3: #{tpu_custom_call.1} parent=1 // pred_check_branch
      %11 = sbr.rel (0) target = $region5
    $region4: #{tpu_custom_call.1} parent=1 // pred_region
      %s13 = ssub.s32 256, 256
      %14 = vsyncadd [#allocation3], %s13
      %s15 = sshll.u32 [#allocation2], 4
      %s16 = int_to_ptr.vmem [resolvable:$true] %s15
      %21 = dma.hbm_to_vmem [thread:$0]  %s0, 256, %s16, [#allocation3], 128, 128, 8
    $region5: #{tpu_custom_call.1} parent=1 // pred_fallthru
      _
    // Predicated region
    $region6: #{tpu_custom_call.1} parent=1 // pred_check
      _
    $region7: #{tpu_custom_call.1} parent=1 // pred_check_branch
      %23 = sbr.rel (0) target = $region9
    $region8: #{tpu_custom_call.1} parent=1 // pred_region
      %s25 = ssub.s32 256, 256
      %26 = vsyncadd [#allocation6], %s25
      %s27 = sshll.u32 [#allocation5], 4
      %s28 = int_to_ptr.vmem [resolvable:$true] %s27
      %33 = dma.hbm_to_vmem [thread:$0]  %s1, 256, %s28, [#allocation6], 128, 128, 8
    $region9: #{tpu_custom_call.1} parent=1 // pred_fallthru
      _
    // Predicated region
    $region10: #{tpu_custom_call.1} parent=1 // pred_check
      _
    $region11: #{tpu_custom_call.1} parent=1 // pred_check_branch
      %35 = sbr.rel (0) target = $region13
    $region12: #{tpu_custom_call.1} parent=1 // pred_region
      %36 = dma.done [#allocation3], 256
    $region13: #{tpu_custom_call.1} parent=1 // pred_fallthru
      _
    // Predicated region
    $region14: #{tpu_custom_call.1} parent=1 // pred_check
      _
    $region15: #{tpu_custom_call.1} parent=1 // pred_check_branch
      %38 = sbr.rel (0) target = $region17
    $region16: #{tpu_custom_call.1} parent=1 // pred_region
      %39 = dma.done [#allocation6], 256
    $region17: #{tpu_custom_call.1} parent=1 // pred_fallthru
      _
    %v40 = vld [vmem:[#allocation2] sm:$0xff]
    %v41 = vld [vmem:[#allocation2 + $0x8] sm:$0xff]
    %v42 = vld [vmem:[#allocation5] sm:$0xff]
    %v43 = vld [vmem:[#allocation5 + $0x8] sm:$0xff]
    %v44 = vsub.f32 %v40, %v42
    %v45 = vsub.f32 %v41, %v43
    %v46 = vsub.f32 0.0, %v44
    %v47 = vsub.f32 0.0, %v45
    %v48 = vmax.f32 %v46, 0.0
    %v49 = vmax.f32 %v47, 0.0
    %v50 = vand.u32 2147483647, %v44
    %v51 = vand.u32 2147483647, %v45
    %v52 = vsub.f32 0.0, %v50
    %v53 = vsub.f32 0.0, %v51
    %v54 = vmul.f32 %v52, 1.442695
    %v55 = vpow.pop %v54
    %v56 = vmul.f32 %v53, 1.442695
    %v57 = vpow.pop %v56
    %v58 = vadd.f32 %v55, 1.0
    %v59 = vlog2.pop %v58
    %v60 = vmul.f32 %v59, 0.6931472
    %v61 = vmul.f32 -0.5, %v55
    %v62 = vadd.f32 %v61, 1.0
    %v63 = vmul.f32 %v62, %v55
    %v64 = vand.u32 2147483647, %v55
    %vm65 = vcmp.lt.f32.partialorder %v64, 0.0004427343
    %v66 = vsel %vm65, %v63, %v60
    %v67 = vadd.f32 %v57, 1.0
    %v68 = vlog2.pop %v67
    %v69 = vmul.f32 %v68, 0.6931472
    %v70 = vmul.f32 -0.5, %v57
    %v71 = vadd.f32 %v70, 1.0
    %v72 = vmul.f32 %v71, %v57
    %v73 = vand.u32 2147483647, %v57
    %vm74 = vcmp.lt.f32.partialorder %v73, 0.0004427343
    %v75 = vsel %vm74, %v72, %v69
    %v76 = vadd.f32 %v48, %v66
    %v77 = vadd.f32 %v49, %v75
    %v78 = vadd.f32 %v76, %v77
    %79 = vst [vmem:[#allocation7] sm:$0xff] %v78
    // Predicated region
    $region18: #{tpu_custom_call.1} parent=1 // pred_check
      _
    $region19: #{tpu_custom_call.1} parent=1 // pred_check_branch
      %81 = sbr.rel (0) target = $region21
    $region20: #{tpu_custom_call.1} parent=1 // pred_region
      %s83 = ssub.s32 128, 128
      %84 = vsyncadd [#allocation4], %s83
      %s86 = sshll.u32 [#allocation7], 4
      %s87 = int_to_ptr.vmem [resolvable:$true] %s86
      %89 = dma.vmem_to_hbm [thread:$0]  %s87, 128, %s2, [#allocation4]
    $region21: #{tpu_custom_call.1} parent=1 // pred_fallthru
      _
    // Predicated region
    $region22: #{tpu_custom_call.1} parent=1 // pred_check
      _
    $region23: #{tpu_custom_call.1} parent=1 // pred_check_branch
      %91 = sbr.rel (0) target = $region25
    $region24: #{tpu_custom_call.1} parent=1 // pred_region
      %92 = dma.done [#allocation4], 128
    $region25: #{tpu_custom_call.1} parent=1 // pred_fallthru
      _
    %93 = vsyncpa [#allocation3], 1
    %94 = vsyncpa [#allocation6], 1
    %95 = vsyncpa [#allocation4], 1

</llo_original>
